<compile_context>
chip_gen: v5e
topology: v5e:2x2
jax: 0.10.0
libtpu: 0.0.40
codegen_flags: <defaults>
</compile_context>

<pallas_src>
import numpy as np
import jax
import jax.numpy as jnp
from jax.experimental import pallas as pl
from jax.experimental.pallas import tpu as pltpu

# ----------------------------- configuration --------------------------------
NUM_CLASSES = 4
FOCAL_ALPHA = 0.25        # cfg.MODEL.DiffusionInst.ALPHA
FOCAL_GAMMA = 2.0         # cfg.MODEL.DiffusionInst.GAMMA
WEIGHT_NUMS = [64, 64, 8]
BIAS_NUMS = [8, 8, 1]
PARAM_DIM = sum(WEIGHT_NUMS) + sum(BIAS_NUMS)     # 153
MASK_CH = 8
DICE_EPS = 1e-5
GIOU_EPS = 1e-7   # guards degenerate (zero-area) boxes; reference asserts validity instead

_VMEM = pl.BlockSpec(memory_space=pltpu.MemorySpace.VMEM)


# --------------------- focal-loss math (shared by 2 kernels) ------------------
def _focal_sum(x, t):
    """sigmoid focal loss, summed -> (1,1).  Padded entries (x=-100, t=0) contribute 0."""
    p = jax.nn.sigmoid(x)
    # numerically-stable BCE with logits
    ce = jnp.maximum(x, 0.0) - x * t + jnp.log1p(jnp.exp(-jnp.abs(x)))
    p_t = p * t + (1.0 - p) * (1.0 - t)
    one_minus = 1.0 - p_t
    if float(FOCAL_GAMMA) == 2.0:
        mod = one_minus * one_minus
    else:
        mod = jnp.power(one_minus, FOCAL_GAMMA)
    alpha_t = FOCAL_ALPHA * t + (1.0 - FOCAL_ALPHA) * (1.0 - t)
    return jnp.sum(alpha_t * ce * mod, keepdims=True)        # (1, 1)


def _focal_only_kernel(lg_ref, tg_ref, out_ref):
    out_ref[...] = _focal_sum(lg_ref[...], tg_ref[...])


# -------------- fused classification (focal) + box (L1 + GIoU) kernel ---------
def _cls_box_kernel(lg_ref, tg_ref, s_ref, sn_ref, tc_ref, txy_ref,
                    ce_ref, box_ref):
    # ---- focal on the lane-dense (rows, 128) slab ----
    ce_ref[...] = _focal_sum(lg_ref[...], tg_ref[...])

    # ---- L1 between normalized pred xyxy and cxcywh->xyxy targets ----
    # boxes are laid out (4, M): coordinates on sublanes, M matched boxes on lanes.
    sn = sn_ref[...]                                     # (4, M)
    tc = tc_ref[...]                                     # (4, M)  cx,cy,w,h rows
    cx, cy, w, h = tc[0:1], tc[1:2], tc[2:3], tc[3:4]
    txyxy = jnp.concatenate(
        [cx - 0.5 * w, cy - 0.5 * h, cx + 0.5 * w, cy + 0.5 * h], axis=0)
    l1_sum = jnp.sum(jnp.abs(sn - txyxy), keepdims=True)           # (1,1)

    # ---- GIoU on absolute xyxy pairs (diagonal of generalized_box_iou) ----
    s = s_ref[...]
    tt = txy_ref[...]
    sx1, sy1, sx2, sy2 = s[0:1], s[1:2], s[2:3], s[3:4]
    tx1, ty1, tx2, ty2 = tt[0:1], tt[1:2], tt[2:3], tt[3:4]
    area_s = (sx2 - sx1) * (sy2 - sy1)
    area_t = (tx2 - tx1) * (ty2 - ty1)
    iw = jnp.maximum(jnp.minimum(sx2, tx2) - jnp.maximum(sx1, tx1), 0.0)
    ih = jnp.maximum(jnp.minimum(sy2, ty2) - jnp.maximum(sy1, ty1), 0.0)
    inter = iw * ih
    union = area_s + area_t - inter
    iou = inter / (union + GIOU_EPS)
    ew = jnp.maximum(jnp.maximum(sx2, tx2) - jnp.minimum(sx1, tx1), 0.0)
    eh = jnp.maximum(jnp.maximum(sy2, ty2) - jnp.minimum(sy1, ty1), 0.0)
    encl = ew * eh
    giou = iou - (encl - union) / (encl + GIOU_EPS)
    giou_sum = jnp.sum(1.0 - giou, keepdims=True)                  # (1,1)

    box_ref[...] = jnp.concatenate([l1_sum, giou_sum], axis=1)     # (1,2)


def focal_loss_sum(logits_slab, tgt_slab):
    return pl.pallas_call(
        _focal_only_kernel,
        out_shape=jax.ShapeDtypeStruct((1, 1), jnp.float32),
        in_specs=[_VMEM, _VMEM],
        out_specs=_VMEM,
    )(logits_slab, tgt_slab)


def cls_box_losses(logits_slab, tgt_slab, src_t, srcn_t, tgtc_t, tgtxy_t):
    return pl.pallas_call(
        _cls_box_kernel,
        out_shape=(jax.ShapeDtypeStruct((1, 1), jnp.float32),
                   jax.ShapeDtypeStruct((1, 2), jnp.float32)),
        in_specs=[_VMEM] * 6,
        out_specs=(_VMEM, _VMEM),
    )(logits_slab, tgt_slab, src_t, srcn_t, tgtc_t, tgtxy_t)


# ------------------- dynamic mask head + dice kernel (gridded) ----------------
def _mask_dice_kernel(inst2img_ref, valid_ref,                  # scalar prefetch (SMEM)
                      w1_ref, w2_ref, w3_ref, b1_ref, b2_ref, b3_ref,
                      feat_ref, gt_ref,
                      out_ref,
                      inter_ref, m2_ref, t2_ref):
    i = pl.program_id(0)           # instance (padded to bucket, "parallel")
    j = pl.program_id(1)           # HW tile ("arbitrary", reduction)
    nj = pl.num_programs(1)

    @pl.when(j == 0)
    def _():
        inter_ref[...] = jnp.zeros_like(inter_ref)
        m2_ref[...] = jnp.zeros_like(m2_ref)
        t2_ref[...] = jnp.zeros_like(t2_ref)

    f = feat_ref[0]                # (8, T)  channels on sublanes, spatial tile on lanes
    w1 = w1_ref[0]                 # (8, 8)
    w2 = w2_ref[0]                 # (8, 8)
    w3 = w3_ref[0]                 # (8, 1)
    b1 = b1_ref[0]                 # (8, 1)
    b2 = b2_ref[0]                 # (8, 1)
    b3 = b3_ref[0]                 # (1, 1)

    # layer 0: per-instance 8x8 1x1-conv as 8 VPU broadcast-MACs (MXU far too small here)
    x = w1[:, 0:1] * f[0:1, :]
    for k in range(1, MASK_CH):
        x = x + w1[:, k:k + 1] * f[k:k + 1, :]
    x = jnp.maximum(x + b1, 0.0)
    # layer 1
    y = w2[:, 0:1] * x[0:1, :]
    for k in range(1, MASK_CH):
        y = y + w2[:, k:k + 1] * x[k:k + 1, :]
    y = jnp.maximum(y + b2, 0.0)
    # layer 2: (1,8)@(8,T) as sublane-weighted XLU reduce (no MXU op)
    logits = jnp.sum(w3 * y, axis=0, keepdims=True) + b3           # (1, T)

    m = jax.nn.sigmoid(logits)                                     # (1, T)
    t = gt_ref[0]                                                  # (1, T)
    inter_ref[...] += jnp.sum(m * t, keepdims=True)
    m2_ref[...] += jnp.sum(m * m, keepdims=True)
    t2_ref[...] += jnp.sum(t, keepdims=True)       # binary mask: t*t == t

    # finalize per-instance dice at the last HW tile (padded instances emit 0)
    @pl.when(jnp.logical_and(j == nj - 1, valid_ref[i] == 1))
    def _():
        out_ref[0] = 1.0 - 2.0 * inter_ref[...] / (m2_ref[...] + t2_ref[...] + DICE_EPS)

    @pl.when(jnp.logical_and(j == nj - 1, valid_ref[i] == 0))
    def _():
        out_ref[0] = jnp.zeros((1, 1), jnp.float32)


def _pick_hw_tile(hw):
    if hw <= 2048:
        return hw
    for t in (2048, 1024, 512, 256, 128):
        if hw % t == 0:
            return t
    return hw


def mask_dice_per_instance(inst2img, valid, w1, w2, w3, b1, b2, b3, feat, gt):
    """feat: [B, 8, HW] shared across instances; gt: [n_pad, 1, HW]; returns [n_pad] dice."""
    n_pad = int(w1.shape[0])
    B, C, HW = feat.shape
    assert C == MASK_CH
    tile = _pick_hw_tile(int(HW))
    n_hw = int(HW) // tile

    out = pl.pallas_call(
        _mask_dice_kernel,
        out_shape=jax.ShapeDtypeStruct((n_pad, 1, 1), jnp.float32),
        grid_spec=pltpu.PrefetchScalarGridSpec(
            num_scalar_prefetch=2,
            grid=(n_pad, n_hw),
            in_specs=[
                pl.BlockSpec((1, MASK_CH, MASK_CH), lambda i, j, im, vd: (i, 0, 0)),  # w1
                pl.BlockSpec((1, MASK_CH, MASK_CH), lambda i, j, im, vd: (i, 0, 0)),  # w2
                pl.BlockSpec((1, MASK_CH, 1), lambda i, j, im, vd: (i, 0, 0)),        # w3
                pl.BlockSpec((1, MASK_CH, 1), lambda i, j, im, vd: (i, 0, 0)),        # b1
                pl.BlockSpec((1, MASK_CH, 1), lambda i, j, im, vd: (i, 0, 0)),        # b2
                pl.BlockSpec((1, 1, 1), lambda i, j, im, vd: (i, 0, 0)),              # b3
                pl.BlockSpec((1, MASK_CH, tile), lambda i, j, im, vd: (im[i], 0, j)), # feat
                pl.BlockSpec((1, 1, tile), lambda i, j, im, vd: (i, 0, j)),           # gt
            ],
            out_specs=pl.BlockSpec((1, 1, 1), lambda i, j, im, vd: (i, 0, 0)),
            scratch_shapes=[pltpu.VMEM((1, 1), jnp.float32)] * 3,
        ),
        compiler_params=pltpu.CompilerParams(
            dimension_semantics=("parallel", "arbitrary"),
            vmem_limit_bytes=32 * 1024 * 1024),
    )(inst2img, valid, w1, w2, w3, b1, b2, b3, feat, gt)
    return out[:, 0, 0]


# ------------------------ glue: parameter parsing -----------------------------
def parse_dynamic_params_jax(params):
    """params: [n, 153] = [w0(64) | w1(64) | w2(8) | b0(8) | b1(8) | b2(1)]."""
    n = params.shape[0]
    w1 = params[:, 0:64].reshape(n, MASK_CH, MASK_CH)
    w2 = params[:, 64:128].reshape(n, MASK_CH, MASK_CH)
    w3 = params[:, 128:136].reshape(n, MASK_CH, 1)
    b1 = params[:, 136:144].reshape(n, MASK_CH, 1)
    b2 = params[:, 144:152].reshape(n, MASK_CH, 1)
    b3 = params[:, 152:153].reshape(n, 1, 1)
    return w1, w2, w3, b1, b2, b3


# --------------------------- criterion forward --------------------------------
def criterion_forward(outputs, targets, indices, num_classes=NUM_CLASSES):
    pred_logits = outputs['pred_logits']       # [B, N, K]
    pred_boxes = outputs['pred_boxes']         # [B, N, 4]  abs xyxy
    pred_kernels = outputs['pred_kernels']     # [B, N, 153]
    mask_feat = outputs['mask_feat']           # [B, 8, H, W]  (NCHW)
    B, N, K = pred_logits.shape
    C, Hm, Wm = mask_feat.shape[1], mask_feat.shape[2], mask_feat.shape[3]
    HW = Hm * Wm
    img_h, img_w = Hm * 4, Wm * 4

    # ----------------- loss_labels: build one-hot targets -----------------
    target_classes = np.full((B, N), num_classes, dtype=np.int64)
    total_matched = 0
    for b in range(B):
        vq, gi = indices[b]
        if len(gi) == 0:
            continue
        target_classes[b, np.asarray(vq)] = np.asarray(targets[b]['labels'])[np.asarray(gi)]
        total_matched += len(gi)
    num_boxes_cls = max(total_matched, 1)

    onehot = np.zeros((B, N, num_classes + 1), np.float32)
    onehot[np.arange(B)[:, None], np.arange(N)[None, :], target_classes] = 1.0
    onehot = onehot[..., :num_classes]                       # drop no-object column

    # lane-dense focal slab: flatten and pad to a multiple of 8*128.
    # Padded logits = -100 with target 0 -> focal term is exactly 0 in f32.
    total = B * N * num_classes
    pad_to = int(np.ceil(total / 1024.0)) * 1024
    logits_flat = pred_logits.reshape(-1).astype(jnp.float32)
    tgt_flat = jnp.asarray(onehot.reshape(-1))
    logits_slab = jnp.concatenate(
        [logits_flat, jnp.full((pad_to - total,), -100.0, jnp.float32)]).reshape(-1, 128)
    tgt_slab = jnp.concatenate(
        [tgt_flat, jnp.zeros((pad_to - total,), jnp.float32)]).reshape(-1, 128)

    # ----------------- loss_boxes gather -----------------
    src_list, srcn_list, tgtc_list, tgtxy_list = [], [], [], []
    for b in range(B):
        vq, gi = indices[b]
        if len(gi) == 0:
            continue
        whwh = jnp.asarray(targets[b]['image_size_xyxy'], dtype=jnp.float32)
        sb = pred_boxes[b][np.asarray(vq)]
        src_list.append(sb)
        srcn_list.append(sb / whwh)
        tgtc_list.append(jnp.asarray(targets[b]['boxes'])[np.asarray(gi)])
        tgtxy_list.append(jnp.asarray(targets[b]['boxes_xyxy'])[np.asarray(gi)])

    if src_list:
        src = jnp.concatenate(src_list, 0).astype(jnp.float32)
        srcn = jnp.concatenate(srcn_list, 0).astype(jnp.float32)
        tgtc = jnp.concatenate(tgtc_list, 0).astype(jnp.float32)
        tgtxy = jnp.concatenate(tgtxy_list, 0).astype(jnp.float32)
        M = int(src.shape[0])
        # transpose to (4, M): coords on sublanes, matched boxes on lanes
        ce_sum, box_sums = cls_box_losses(logits_slab, tgt_slab,
                                          src.T, srcn.T, tgtc.T, tgtxy.T)
        loss_ce = ce_sum[0, 0] / num_boxes_cls
        loss_bbox = box_sums[0, 0] / M
        loss_giou = box_sums[0, 1] / M
    else:
        ce_sum = focal_loss_sum(logits_slab, tgt_slab)
        loss_ce = ce_sum[0, 0] / num_boxes_cls
        loss_bbox = jnp.sum(pred_boxes) * 0.0
        loss_giou = jnp.sum(pred_boxes) * 0.0

    # ----------------- loss_masks (dynamic conv + dice) -----------------
    inst2img, valid, param_rows, gt_rows = [], [], [], []
    for b in range(B):
        vq, gi = indices[b]
        if len(gi) == 0:
            continue
        ni = len(gi)
        inst2img += [b] * ni
        valid += [1] * ni
        param_rows.append(pred_kernels[b][np.asarray(vq)])               # [ni, 153]
        gm = np.asarray(targets[b]['masks'])[np.asarray(gi)]             # [ni, h, w]
        h, w = gm.shape[1], gm.shape[2]
        gm = np.pad(gm, ((0, 0), (0, img_h - h), (0, img_w - w)))
        gm = gm[:, 2::4, 2::4]                                           # stride-4, offset 2
        gt_rows.append((gm > 0.5).astype(np.float32).reshape(ni, HW))
    num_mask = len(inst2img)

    if num_mask > 0:
        n_pad = int(np.ceil(num_mask / 8.0)) * 8     # bucket -> fewer recompiles
        params_all = jnp.concatenate(param_rows, 0).astype(jnp.float32)
        params_all = jnp.pad(params_all, ((0, n_pad - num_mask), (0, 0)))
        gts = np.zeros((n_pad, HW), np.float32)
        gts[:num_mask] = np.concatenate(gt_rows, 0)
        inst2img = np.asarray(inst2img + [0] * (n_pad - num_mask), np.int32)
        valid = np.asarray(valid + [0] * (n_pad - num_mask), np.int32)

        w1, w2, w3, b1, b2, b3 = parse_dynamic_params_jax(params_all)
        feat_flat = mask_feat.reshape(B, C, HW).astype(jnp.float32)      # shared, no broadcast
        dice = mask_dice_per_instance(jnp.asarray(inst2img), jnp.asarray(valid),
                                      w1, w2, w3, b1, b2, b3,
                                      feat_flat,
                                      jnp.asarray(gts).reshape(n_pad, 1, HW))
        loss_masks = jnp.sum(dice) / num_mask
    else:
        loss_masks = jnp.sum(pred_boxes) * 0.0

    return {'loss_ce': loss_ce, 'loss_bbox': loss_bbox,
            'loss_giou': loss_giou, 'loss_masks': loss_masks}


# ----------------------------------- main -------------------------------------
if __name__ == "__main__":
    key = jax.random.PRNGKey(0)
    keys = jax.random.split(key, 8)

    B, N, K = 2, 8, NUM_CLASSES
    C, Hm, Wm = MASK_CH, 16, 16
    img_h, img_w = Hm * 4, Wm * 4
    G = [3, 2]                       # gt instances per image

    pred_logits = jax.random.normal(keys[0], (B, N, K), dtype=jnp.float32)
    xy1 = jax.random.uniform(keys[1], (B, N, 2), minval=0.0, maxval=30.0)
    wh = jax.random.uniform(keys[2], (B, N, 2), minval=4.0, maxval=30.0)
    pred_boxes = jnp.concatenate([xy1, xy1 + wh], axis=-1).astype(jnp.float32)
    pred_kernels = (0.1 * jax.random.normal(keys[3], (B, N, PARAM_DIM))).astype(jnp.float32)
    mask_feat = jax.random.normal(keys[4], (B, C, Hm, Wm), dtype=jnp.float32)

    rng = np.random.default_rng(0)
    targets = []
    for b in range(B):
        g = G[b]
        labels = rng.integers(0, K, size=g).astype(np.int64)
        cxcy = rng.uniform(0.3, 0.7, size=(g, 2))
        whn = rng.uniform(0.1, 0.4, size=(g, 2))
        boxes = np.concatenate([cxcy, whn], axis=1).astype(np.float32)       # cxcywh, normalized
        whwh = np.array([img_w, img_h, img_w, img_h], np.float32)
        boxes_xyxy = (np.concatenate([cxcy - whn / 2, cxcy + whn / 2], axis=1)
                      .astype(np.float32) * whwh)                            # abs xyxy
        masks = (rng.uniform(size=(g, img_h, img_w)) > 0.5).astype(np.float32)
        targets.append({'labels': labels, 'boxes': boxes, 'boxes_xyxy': boxes_xyxy,
                        'image_size_xyxy': whwh, 'masks': masks})

    # matched (valid_query, gt_multi_idx) pairs — stands in for the dynamic-K matcher
    indices = [
        (np.array([0, 2, 5]), np.array([0, 1, 2])),
        (np.array([1, 3]), np.array([0, 1])),
    ]

    outputs = {'pred_logits': pred_logits, 'pred_boxes': pred_boxes,
               'pred_kernels': pred_kernels, 'mask_feat': mask_feat}

    losses = criterion_forward(outputs, targets, indices)
    losses = {k: jax.block_until_ready(v) for k, v in losses.items()}
    for k, v in losses.items():
        assert np.isfinite(np.asarray(v)).all(), f"non-finite loss {k}"
    print("KERNEL_OK")
</pallas_src>

<mosaic_0001>
module attributes {stable_mosaic.version = 11 : i64} {
  func.func @_cls_box_kernel(%arg0: memref<8x128xf32, #tpu.memory_space<vmem>>, %arg1: memref<8x128xf32, #tpu.memory_space<vmem>>, %arg2: memref<4x5xf32, #tpu.memory_space<vmem>>, %arg3: memref<4x5xf32, #tpu.memory_space<vmem>>, %arg4: memref<4x5xf32, #tpu.memory_space<vmem>>, %arg5: memref<4x5xf32, #tpu.memory_space<vmem>>, %arg6: memref<1x1xf32, #tpu.memory_space<vmem>>, %arg7: memref<1x2xf32, #tpu.memory_space<vmem>>) attributes {dimension_semantics = [], scalar_prefetch = 0 : i64, scratch_operands = 0 : i64, tpu.core_type = #tpu.core_type<tc>} {
    %c0 = arith.constant 0 : index
    %c0_0 = arith.constant 0 : index
    %0 = vector.load %arg0[%c0, %c0_0] : memref<8x128xf32, #tpu.memory_space<vmem>>, vector<8x128xf32>
    %c0_1 = arith.constant 0 : index
    %c0_2 = arith.constant 0 : index
    %1 = vector.load %arg1[%c0_1, %c0_2] : memref<8x128xf32, #tpu.memory_space<vmem>>, vector<8x128xf32>
    %2 = arith.negf %0 : vector<8x128xf32>
    %3 = math.exp %2 : vector<8x128xf32>
    %cst = arith.constant 1.000000e+00 : f32
    %4 = vector.broadcast %cst : f32 to vector<8x128xf32>
    %5 = arith.addf %4, %3 : vector<8x128xf32>
    %6 = arith.divf %4, %5 : vector<8x128xf32>
    %cst_3 = arith.constant 0.000000e+00 : f32
    %7 = vector.broadcast %cst_3 : f32 to vector<8x128xf32>
    %8 = arith.maximumf %0, %7 : vector<8x128xf32>
    %9 = arith.mulf %0, %1 : vector<8x128xf32>
    %10 = arith.subf %8, %9 : vector<8x128xf32>
    %11 = math.absf %0 : vector<8x128xf32>
    %cst_4 = arith.constant 0.000000e+00 : f32
    %12 = vector.broadcast %cst_4 : f32 to vector<8x128xf32>
    %13 = arith.subf %12, %11 : vector<8x128xf32>
    %14 = math.exp %13 : vector<8x128xf32>
    %15 = math.log1p %14 : vector<8x128xf32>
    %16 = arith.addf %10, %15 : vector<8x128xf32>
    %17 = arith.mulf %6, %1 : vector<8x128xf32>
    %cst_5 = arith.constant 1.000000e+00 : f32
    %18 = vector.broadcast %cst_5 : f32 to vector<8x128xf32>
    %19 = arith.subf %18, %6 : vector<8x128xf32>
    %cst_6 = arith.constant 1.000000e+00 : f32
    %20 = vector.broadcast %cst_6 : f32 to vector<8x128xf32>
    %21 = arith.subf %20, %1 : vector<8x128xf32>
    %22 = arith.mulf %19, %21 : vector<8x128xf32>
    %23 = arith.addf %17, %22 : vector<8x128xf32>
    %cst_7 = arith.constant 1.000000e+00 : f32
    %24 = vector.broadcast %cst_7 : f32 to vector<8x128xf32>
    %25 = arith.subf %24, %23 : vector<8x128xf32>
    %26 = arith.mulf %25, %25 : vector<8x128xf32>
    %cst_8 = arith.constant 2.500000e-01 : f32
    %27 = vector.broadcast %cst_8 : f32 to vector<8x128xf32>
    %28 = arith.mulf %27, %1 : vector<8x128xf32>
    %cst_9 = arith.constant 1.000000e+00 : f32
    %29 = vector.broadcast %cst_9 : f32 to vector<8x128xf32>
    %30 = arith.subf %29, %1 : vector<8x128xf32>
    %cst_10 = arith.constant 7.500000e-01 : f32
    %31 = vector.broadcast %cst_10 : f32 to vector<8x128xf32>
    %32 = arith.mulf %31, %30 : vector<8x128xf32>
    %33 = arith.addf %28, %32 : vector<8x128xf32>
    %34 = arith.mulf %33, %16 : vector<8x128xf32>
    %35 = arith.mulf %34, %26 : vector<8x128xf32>
    %36 = vector.shape_cast %35 : vector<8x128xf32> to vector<1x8x128xf32>
    %cst_11 = arith.constant dense<0.000000e+00> : vector<1xf32>
    %37 = vector.multi_reduction <add>, %36, %cst_11 [1, 2] : vector<1x8x128xf32> to vector<1xf32>
    %38 = vector.shape_cast %37 : vector<1xf32> to vector<1x1x1xf32>
    %39 = vector.extract %38[0, 0, 0] : f32 from vector<1x1x1xf32>
    %40 = vector.broadcast %39 : f32 to vector<1x1xf32>
    %c0_12 = arith.constant 0 : index
    %c0_13 = arith.constant 0 : index
    %41 = vector.load %arg6[%c0_12, %c0_13] : memref<1x1xf32, #tpu.memory_space<vmem>>, vector<1x1xf32>
    tpu.vector_store %arg6[%c0_12, %c0_13], %40 {strides = array<i32>} : memref<1x1xf32, #tpu.memory_space<vmem>>, vector<1x1xf32>,
    %c0_14 = arith.constant 0 : index
    %c0_15 = arith.constant 0 : index
    %42 = vector.load %arg3[%c0_14, %c0_15] : memref<4x5xf32, #tpu.memory_space<vmem>>, vector<4x5xf32>
    %c0_16 = arith.constant 0 : index
    %c0_17 = arith.constant 0 : index
    %43 = vector.load %arg4[%c0_16, %c0_17] : memref<4x5xf32, #tpu.memory_space<vmem>>, vector<4x5xf32>
    %44 = vector.extract_strided_slice %43 {offsets = [0, 0], sizes = [1, 5], strides = [1, 1]} : vector<4x5xf32> to vector<1x5xf32>
    %45 = vector.extract_strided_slice %43 {offsets = [1, 0], sizes = [1, 5], strides = [1, 1]} : vector<4x5xf32> to vector<1x5xf32>
    %46 = vector.extract_strided_slice %43 {offsets = [2, 0], sizes = [1, 5], strides = [1, 1]} : vector<4x5xf32> to vector<1x5xf32>
    %47 = vector.extract_strided_slice %43 {offsets = [3, 0], sizes = [1, 5], strides = [1, 1]} : vector<4x5xf32> to vector<1x5xf32>
    %cst_18 = arith.constant 5.000000e-01 : f32
    %48 = vector.broadcast %cst_18 : f32 to vector<1x5xf32>
    %49 = arith.mulf %48, %46 : vector<1x5xf32>
    %50 = arith.subf %44, %49 : vector<1x5xf32>
    %cst_19 = arith.constant 5.000000e-01 : f32
    %51 = vector.broadcast %cst_19 : f32 to vector<1x5xf32>
    %52 = arith.mulf %51, %47 : vector<1x5xf32>
    %53 = arith.subf %45, %52 : vector<1x5xf32>
    %cst_20 = arith.constant 5.000000e-01 : f32
    %54 = vector.broadcast %cst_20 : f32 to vector<1x5xf32>
    %55 = arith.mulf %54, %46 : vector<1x5xf32>
    %56 = arith.addf %44, %55 : vector<1x5xf32>
    %cst_21 = arith.constant 5.000000e-01 : f32
    %57 = vector.broadcast %cst_21 : f32 to vector<1x5xf32>
    %58 = arith.mulf %57, %47 : vector<1x5xf32>
    %59 = arith.addf %45, %58 : vector<1x5xf32>
    %60 = tpu.concatenate %50, %53, %56, %59 in 0 : vector<1x5xf32>, vector<1x5xf32>, vector<1x5xf32>, vector<1x5xf32> -> vector<4x5xf32>
    %61 = arith.subf %42, %60 : vector<4x5xf32>
    %62 = math.absf %61 : vector<4x5xf32>
    %63 = vector.shape_cast %62 : vector<4x5xf32> to vector<1x4x5xf32>
    %cst_22 = arith.constant dense<0.000000e+00> : vector<1xf32>
    %64 = vector.multi_reduction <add>, %63, %cst_22 [1, 2] : vector<1x4x5xf32> to vector<1xf32>
    %65 = vector.shape_cast %64 : vector<1xf32> to vector<1x1x1xf32>
    %66 = vector.extract %65[0, 0, 0] : f32 from vector<1x1x1xf32>
    %67 = vector.broadcast %66 : f32 to vector<1x1xf32>
    %c0_23 = arith.constant 0 : index
    %c0_24 = arith.constant 0 : index
    %68 = vector.load %arg2[%c0_23, %c0_24] : memref<4x5xf32, #tpu.memory_space<vmem>>, vector<4x5xf32>
    %c0_25 = arith.constant 0 : index
    %c0_26 = arith.constant 0 : index
    %69 = vector.load %arg5[%c0_25, %c0_26] : memref<4x5xf32, #tpu.memory_space<vmem>>, vector<4x5xf32>
    %70 = vector.extract_strided_slice %68 {offsets = [0, 0], sizes = [1, 5], strides = [1, 1]} : vector<4x5xf32> to vector<1x5xf32>
    %71 = vector.extract_strided_slice %68 {offsets = [1, 0], sizes = [1, 5], strides = [1, 1]} : vector<4x5xf32> to vector<1x5xf32>
    %72 = vector.extract_strided_slice %68 {offsets = [2, 0], sizes = [1, 5], strides = [1, 1]} : vector<4x5xf32> to vector<1x5xf32>
    %73 = vector.extract_strided_slice %68 {offsets = [3, 0], sizes = [1, 5], strides = [1, 1]} : vector<4x5xf32> to vector<1x5xf32>
    %74 = vector.extract_strided_slice %69 {offsets = [0, 0], sizes = [1, 5], strides = [1, 1]} : vector<4x5xf32> to vector<1x5xf32>
    %75 = vector.extract_strided_slice %69 {offsets = [1, 0], sizes = [1, 5], strides = [1, 1]} : vector<4x5xf32> to vector<1x5xf32>
    %76 = vector.extract_strided_slice %69 {offsets = [2, 0], sizes = [1, 5], strides = [1, 1]} : vector<4x5xf32> to vector<1x5xf32>
    %77 = vector.extract_strided_slice %69 {offsets = [3, 0], sizes = [1, 5], strides = [1, 1]} : vector<4x5xf32> to vector<1x5xf32>
    %78 = arith.subf %72, %70 : vector<1x5xf32>
    %79 = arith.subf %73, %71 : vector<1x5xf32>
    %80 = arith.mulf %78, %79 : vector<1x5xf32>
    %81 = arith.subf %76, %74 : vector<1x5xf32>
    %82 = arith.subf %77, %75 : vector<1x5xf32>
    %83 = arith.mulf %81, %82 : vector<1x5xf32>
    %84 = arith.minimumf %72, %76 : vector<1x5xf32>
    %85 = arith.maximumf %70, %74 : vector<1x5xf32>
    %86 = arith.subf %84, %85 : vector<1x5xf32>
    %cst_27 = arith.constant 0.000000e+00 : f32
    %87 = vector.broadcast %cst_27 : f32 to vector<1x5xf32>
    %88 = arith.maximumf %86, %87 : vector<1x5xf32>
    %89 = arith.minimumf %73, %77 : vector<1x5xf32>
    %90 = arith.maximumf %71, %75 : vector<1x5xf32>
    %91 = arith.subf %89, %90 : vector<1x5xf32>
    %cst_28 = arith.constant 0.000000e+00 : f32
    %92 = vector.broadcast %cst_28 : f32 to vector<1x5xf32>
    %93 = arith.maximumf %91, %92 : vector<1x5xf32>
    %94 = arith.mulf %88, %93 : vector<1x5xf32>
    %95 = arith.addf %80, %83 : vector<1x5xf32>
    %96 = arith.subf %95, %94 : vector<1x5xf32>
    %cst_29 = arith.constant 1.000000e-07 : f32
    %97 = vector.broadcast %cst_29 : f32 to vector<1x5xf32>
    %98 = arith.addf %96, %97 : vector<1x5xf32>
    %99 = arith.divf %94, %98 : vector<1x5xf32>
    %100 = arith.maximumf %72, %76 : vector<1x5xf32>
    %101 = arith.minimumf %70, %74 : vector<1x5xf32>
    %102 = arith.subf %100, %101 : vector<1x5xf32>
    %cst_30 = arith.constant 0.000000e+00 : f32
    %103 = vector.broadcast %cst_30 : f32 to vector<1x5xf32>
    %104 = arith.maximumf %102, %103 : vector<1x5xf32>
    %105 = arith.maximumf %73, %77 : vector<1x5xf32>
    %106 = arith.minimumf %71, %75 : vector<1x5xf32>
    %107 = arith.subf %105, %106 : vector<1x5xf32>
    %cst_31 = arith.constant 0.000000e+00 : f32
    %108 = vector.broadcast %cst_31 : f32 to vector<1x5xf32>
    %109 = arith.maximumf %107, %108 : vector<1x5xf32>
    %110 = arith.mulf %104, %109 : vector<1x5xf32>
    %111 = arith.subf %110, %96 : vector<1x5xf32>
    %cst_32 = arith.constant 1.000000e-07 : f32
    %112 = vector.broadcast %cst_32 : f32 to vector<1x5xf32>
    %113 = arith.addf %110, %112 : vector<1x5xf32>
    %114 = arith.divf %111, %113 : vector<1x5xf32>
    %115 = arith.subf %99, %114 : vector<1x5xf32>
    %cst_33 = arith.constant 1.000000e+00 : f32
    %116 = vector.broadcast %cst_33 : f32 to vector<1x5xf32>
    %117 = arith.subf %116, %115 : vector<1x5xf32>
    %118 = vector.shape_cast %117 : vector<1x5xf32> to vector<1x1x5xf32>
    %cst_34 = arith.constant dense<0.000000e+00> : vector<1xf32>
    %119 = vector.multi_reduction <add>, %118, %cst_34 [1, 2] : vector<1x1x5xf32> to vector<1xf32>
    %120 = vector.shape_cast %119 : vector<1xf32> to vector<1x1x1xf32>
    %121 = vector.extract %120[0, 0, 0] : f32 from vector<1x1x1xf32>
    %122 = vector.broadcast %121 : f32 to vector<1x1xf32>
    %123 = tpu.concatenate %67, %122 in 1 : vector<1x1xf32>, vector<1x1xf32> -> vector<1x2xf32>
    %c0_35 = arith.constant 0 : index
    %c0_36 = arith.constant 0 : index
    %124 = vector.load %arg7[%c0_35, %c0_36] : memref<1x2xf32, #tpu.memory_space<vmem>>, vector<1x2xf32>
    tpu.vector_store %arg7[%c0_35, %c0_36], %123 {strides = array<i32>} : memref<1x2xf32, #tpu.memory_space<vmem>>, vector<1x2xf32>,
    return
  }
}

</mosaic_0001>

<llo_original>
// kernel: tpu_custom_call.1
$region0: #{tpu_custom_call.1}
  #allocation0 [shape = 'u32[]', space=smem, size = 0x4, offset = 0x4, fixed_abs, tag = 'smem constant byte address 0x4 - core index']
  #allocation1 [shape = 'u32[72,128]{1,0:T(1,128)}', space=vmem, size = 0x9000, scoped, tag = 'internal scratch']
  %s0 = inlined_call_operand.hbm [shape: f32[8,128], index: 0, kind: input, shape index: {}]
  %s1 = inlined_call_operand.hbm [shape: f32[8,128], index: 1, kind: input, shape index: {}]
  %s2 = inlined_call_operand.hbm [shape: f32[4,5], index: 2, kind: input, shape index: {}]
  %s3 = inlined_call_operand.hbm [shape: f32[4,5], index: 3, kind: input, shape index: {}]
  %s4 = inlined_call_operand.hbm [shape: f32[4,5], index: 4, kind: input, shape index: {}]
  %s5 = inlined_call_operand.vmem [shape: f32[4,5], index: 5, kind: input, shape index: {}]
  %s6 = inlined_call_operand.hbm [shape: f32[1,1], index: 6, kind: output, shape index: {0}]
  %s7 = inlined_call_operand.hbm [shape: f32[1,2], index: 7, kind: output, shape index: {1}]
  %8 = xla_tuple %s6, %s7
  %s9 = sld [smem:[#allocation0]]
  $region62: #{tpu_custom_call.1} parent=0
    _
  %s11 = ssub.s32 1, %s9
  %s12 = scalar_select 0, %s11, %s9
  $region1: #{tpu_custom_call.1} parent=0
    #allocation2 [shape = 'u8[4096]{0}', space=vmem, size = 0x1000, scoped, tag = 'input window, operand 0, single buffered']
    #allocation3 [shape = 's32[1]{0}', space=sflag, size = 0x4, scoped, tag = 'scoped memory for tpu_custom_call.1']
    #allocation4 [shape = 's32[1]{0}', space=sflag, size = 0x4, scoped, tag = 'scoped memory for tpu_custom_call.1']
    #allocation5 [shape = 'u8[4096]{0}', space=vmem, size = 0x1000, scoped, tag = 'input window, operand 1, single buffered']
    #allocation6 [shape = 's32[1]{0}', space=sflag, size = 0x4, scoped, tag = 'scoped memory for tpu_custom_call.1']
    #allocation7 [shape = 'u8[2048]{0}', space=vmem, size = 0x800, scoped, tag = 'input window, operand 2, single buffered']
    #allocation8 [shape = 'u8[2048]{0}', space=vmem, size = 0x800, scoped, tag = 'input window, operand 3, single buffered']
    #allocation9 [shape = 's32[1]{0}', space=sflag, size = 0x4, scoped, tag = 'scoped memory for tpu_custom_call.1']
    #allocation10 [shape = 'u8[2048]{0}', space=vmem, size = 0x800, scoped, tag = 'input window, operand 4, single buffered']
    #allocation11 [shape = 'u8[512]{0}', space=vmem, size = 0x400, scoped, tag = 'output window, operand 0, single buffered']
    #allocation12 [shape = 'u8[512]{0}', space=vmem, size = 0x400, scoped, tag = 'output window, operand 1, single buffered']
    #allocation13 [shape = 's32[1]{0}', space=sflag, size = 0x4, scoped, tag = 'scoped memory for tpu_custom_call.1']
    %13 = vsyncpa [#allocation3], 0
    %14 = vsyncpa [#allocation6], 0
    %15 = vsyncpa [#allocation9], 0
    %16 = vsyncpa [#allocation4], 0
    %17 = vsyncpa [#allocation13], 0
    // Predicated region
    $region2: #{tpu_custom_call.1} parent=1 // pred_check
      _
    $region3: #{tpu_custom_call.1} parent=1 // pred_check_branch
      %19 = sbr.rel (0) target = $region5
    $region4: #{tpu_custom_call.1} parent=1 // pred_region
      %21 = vsyncadd [#allocation3], 0
      %s23 = sshll.u32 %s0, 4
      %s24 = int_to_ptr.hbm [resolvable:$true] %s23
      %s25 = sshll.u32 [#allocation2], 4
      %s26 = int_to_ptr.vmem [resolvable:$true] %s25
      %28 = dma.hbm_to_vmem [thread:$0]  %s24, 128, %s26, [#allocation3]
    $region5: #{tpu_custom_call.1} parent=1 // pred_fallthru
      _
    // Predicated region
    $region6: #{tpu_custom_call.1} parent=1 // pred_check
      _
    $region7: #{tpu_custom_call.1} parent=1 // pred_check_branch
      %30 = sbr.rel (0) target = $region9
    $region8: #{tpu_custom_call.1} parent=1 // pred_region
      %32 = vsyncadd [#allocation6], 0
      %s34 = sshll.u32 %s1, 4
      %s35 = int_to_ptr.hbm [resolvable:$true] %s34
      %s36 = sshll.u32 [#allocation5], 4
      %s37 = int_to_ptr.vmem [resolvable:$true] %s36
      %39 = dma.hbm_to_vmem [thread:$0]  %s35, 128, %s37, [#allocation6]
    $region9: #{tpu_custom_call.1} parent=1 // pred_fallthru
      _
    // Predicated region
    $region10: #{tpu_custom_call.1} parent=1 // pred_check
      _
    $region11: #{tpu_custom_call.1} parent=1 // pred_check_branch
      %41 = sbr.rel (0) target = $region13
    $region12: #{tpu_custom_call.1} parent=1 // pred_region
      %43 = vsyncadd [#allocation6], 0
      %s45 = sshll.u32 %s2, 4
      %s46 = int_to_ptr.hbm [resolvable:$true] %s45
      %s47 = sshll.u32 [#allocation7], 4
      %s48 = int_to_ptr.vmem [resolvable:$true] %s47
      %50 = dma.hbm_to_vmem [thread:$0]  %s46, 64, %s48, [#allocation6]
    $region13: #{tpu_custom_call.1} parent=1 // pred_fallthru
      _
    // Predicated region
    $region14: #{tpu_custom_call.1} parent=1 // pred_check
      _
    $region15: #{tpu_custom_call.1} parent=1 // pred_check_branch
      %52 = sbr.rel (0) target = $region17
    $region16: #{tpu_custom_call.1} parent=1 // pred_region
      %54 = vsyncadd [#allocation9], 0
      %s56 = sshll.u32 %s3, 4
      %s57 = int_to_ptr.hbm [resolvable:$true] %s56
      %s58 = sshll.u32 [#allocation8], 4
      %s59 = int_to_ptr.vmem [resolvable:$true] %s58
      %61 = dma.hbm_to_vmem [thread:$0]  %s57, 64, %s59, [#allocation9]
    $region17: #{tpu_custom_call.1} parent=1 // pred_fallthru
      _
    // Predicated region
    $region18: #{tpu_custom_call.1} parent=1 // pred_check
      _
    $region19: #{tpu_custom_call.1} parent=1 // pred_check_branch
      %63 = sbr.rel (0) target = $region21
    $region20: #{tpu_custom_call.1} parent=1 // pred_region
      %65 = vsyncadd [#allocation9], 0
      %s67 = sshll.u32 %s4, 4
      %s68 = int_to_ptr.hbm [resolvable:$true] %s67
      %s69 = sshll.u32 [#allocation10], 4
      %s70 = int_to_ptr.vmem [resolvable:$true] %s69
      %72 = dma.hbm_to_vmem [thread:$0]  %s68, 64, %s70, [#allocation9]
    $region21: #{tpu_custom_call.1} parent=1 // pred_fallthru
      _
    // Predicated region
    $region22: #{tpu_custom_call.1} parent=1 // pred_check
      _
    $region23: #{tpu_custom_call.1} parent=1 // pred_check_branch
      %74 = sbr.rel (0) target = $region25
    $region24: #{tpu_custom_call.1} parent=1 // pred_region
      _
    $region25: #{tpu_custom_call.1} parent=1 // pred_fallthru
      _
    // Predicated region
    $region26: #{tpu_custom_call.1} parent=1 // pred_check
      _
    $region27: #{tpu_custom_call.1} parent=1 // pred_check_branch
      %76 = sbr.rel (0) target = $region29
    $region28: #{tpu_custom_call.1} parent=1 // pred_region
      %78 = dma.done [#allocation3], 128
    $region29: #{tpu_custom_call.1} parent=1 // pred_fallthru
      _
    // Predicated region
    $region30: #{tpu_custom_call.1} parent=1 // pred_check
      _
    $region31: #{tpu_custom_call.1} parent=1 // pred_check_branch
      %80 = sbr.rel (0) target = $region33
    $region32: #{tpu_custom_call.1} parent=1 // pred_region
      %82 = dma.done [#allocation6], 128
    $region33: #{tpu_custom_call.1} parent=1 // pred_fallthru
      _
    // Predicated region
    $region34: #{tpu_custom_call.1} parent=1 // pred_check
      _
    $region35: #{tpu_custom_call.1} parent=1 // pred_check_branch
      %84 = sbr.rel (0) target = $region37
    $region36: #{tpu_custom_call.1} parent=1 // pred_region
      %86 = dma.done [#allocation6], 64
    $region37: #{tpu_custom_call.1} parent=1 // pred_fallthru
      _
    // Predicated region
    $region38: #{tpu_custom_call.1} parent=1 // pred_check
      _
    $region39: #{tpu_custom_call.1} parent=1 // pred_check_branch
      %88 = sbr.rel (0) target = $region41
    $region40: #{tpu_custom_call.1} parent=1 // pred_region
      %90 = dma.done [#allocation9], 64
    $region41: #{tpu_custom_call.1} parent=1 // pred_fallthru
      _
    // Predicated region
    $region42: #{tpu_custom_call.1} parent=1 // pred_check
      _
    $region43: #{tpu_custom_call.1} parent=1 // pred_check_branch
      %92 = sbr.rel (0) target = $region45
    $region44: #{tpu_custom_call.1} parent=1 // pred_region
      %94 = dma.done [#allocation9], 64
    $region45: #{tpu_custom_call.1} parent=1 // pred_fallthru
      _
    %v95 = vld [vmem:[#allocation2] sm:$0xff]
    %v96 = vld [vmem:[#allocation5] sm:$0xff]
    %v97 = vxor.u32 %v95, 2147483648
    %v98 = vmul.f32 %v97, 1.442695
    %v99 = vpow.pop %v98
    %v100 = vadd.f32 %v99, 1.0
    %v101 = vrcp.pop %v100
    %v102 = vmul.f32 %v100, %v101
    %v103 = vsub.f32 1.0, %v102
    %v104 = vmul.f32 %v101, %v103
    %v105 = vadd.f32 %v101, %v104
    %vm106 = vweird.f32 %v100
    %vm107 = vweird.f32 %v101
    %vm108 = vmor %vm106, %vm107
    %v109 = vsel %vm108, %v101, %v105
    %v110 = vand.u32 2147483647, %v100
    %vm111 = vcmp.eq.f32.partialorder %v110, 8.507059e+37
    %v112 = vand.u32 %v100, 2147483648
    %v113 = vor.u32 1.1754944e-38, %v112
    %v114 = vsel %vm111, %v113, %v109
    %v115 = vmul.f32 1.0, %v114
    %v116 = vmax.f32 %v95, 0.0
    %v117 = vmul.f32 %v95, %v96
    %v118 = vsub.f32 %v116, %v117
    %v119 = vand.u32 2147483647, %v95
    %v120 = vsub.f32 0.0, %v119
    %v121 = vmul.f32 %v120, 1.442695
    %v122 = vpow.pop %v121
    %v123 = vadd.f32 %v122, 1.0
    %v124 = vlog2.pop %v123
    %v125 = vmul.f32 %v124, 0.6931472
    %v126 = vmul.f32 -0.5, %v122
    %v127 = vadd.f32 %v126, 1.0
    %v128 = vmul.f32 %v127, %v122
    %v129 = vand.u32 2147483647, %v122
    %vm130 = vcmp.lt.f32.partialorder %v129, 0.0004427343
    %v131 = vsel %vm130, %v128, %v125
    %v132 = vadd.f32 %v118, %v131
    %v133 = vmul.f32 %v115, %v96
    %v134 = vsub.f32 1.0, %v115
    %v135 = vsub.f32 1.0, %v96
    %v136 = vmul.f32 %v134, %v135
    %v137 = vadd.f32 %v133, %v136
    %v138 = vsub.f32 1.0, %v137
    %v139 = vmul.f32 %v138, %v138
    %v140 = vmul.f32 %v96, 0.25
    %v141 = vmul.f32 %v135, 0.75
    %v142 = vadd.f32 %v140, %v141
    %v143 = vmul.f32 %v142, %v132
    %v144 = vmul.f32 %v143, %v139
    %145 = vadd.xlane.f32.xlu0 %v144
    %v146 = vpop.xlane.xlu0 %145
    %v147 = vrot.slane %v146, 4
    %v148 = vadd.f32 %v146, %v147
    %v149 = vrot.slane %v148, 2
    %v150 = vadd.f32 %v148, %v149
    %v151 = vrot.slane %v150, 1
    %v152 = vadd.f32 %v150, %v151
    %s153 = vtos %v152
    %v154 = vstv %s153
    %vm155 = vcmask 0
    %156 = vst.msk [vmem:[#allocation11] sm:$0x1] %vm155, %v154
    %v157 = vld [vmem:[#allocation8] sm:$0xf]
    %v158 = vld [vmem:[#allocation10] sm:$0xf]
    %v159 = vmul.f32 %v158, 0.5
    %v161 = vrot.slane %v159, 2
    %v163 = vsub.f32 %v158, %v161
    %v164 = vadd.f32 %v158, %v161
    %v166 = vrot.slane %v164, 6
    %vm168 = vcmask 1041408
    %v169 = vsel %vm168, %v163, %v166
    %vm170 = vcmask 1042432
    %v171 = vsel %vm170, %v169, %v166
    %v172 = vsub.f32 %v157, %v171
    %v173 = vand.u32 2147483647, %v172
    %vm174 = vcmask 35840
    %v175 = vsel %vm174, %v173, 0.0
    %176 = vadd.xlane.f32.xlu0 %v175
    %v177 = vpop.xlane.xlu0 %176
    %v178 = vrot.slane %v177, 4
    %v179 = vadd.f32 %v177, %v178
    %v180 = vrot.slane %v179, 2
    %v181 = vadd.f32 %v179, %v180
    %v182 = vrot.slane %v181, 1
    %v183 = vadd.f32 %v181, %v182
    %s184 = vtos %v183
    %v185 = vstv %s184
    %v186 = vld [vmem:[#allocation7] sm:$0xf]
    %v187 = vld [vmem:[%s5] sm:$0xf]
    %v189 = vrot.slane %v186, 6
    %v191 = vsub.f32 %v186, %v189
    %v193 = vrot.slane %v191, 1
    %v195 = vmul.f32 %v191, %v193
    %v197 = vrot.slane %v187, 6
    %v199 = vsub.f32 %v187, %v197
    %v201 = vrot.slane %v199, 1
    %v203 = vmul.f32 %v199, %v201
    %v204 = vmin.f32 %v186, %v187
    %v205 = vmax.f32 %v186, %v187
    %v207 = vrot.slane %v205, 6
    %v209 = vsub.f32 %v204, %v207
    %v210 = vmax.f32 %v209, 0.0
    %v212 = vrot.slane %v210, 1
    %v214 = vmul.f32 %v210, %v212
    %v215 = vadd.f32 %v195, %v203
    %v216 = vsub.f32 %v215, %v214
    %v217 = vadd.f32 %v216, 1e-07
    %v218 = vrcp.pop %v217
    %v219 = vmul.f32 %v217, %v218
    %v220 = vsub.f32 1.0, %v219
    %v221 = vmul.f32 %v218, %v220
    %v222 = vadd.f32 %v218, %v221
    %vm223 = vweird.f32 %v217
    %vm224 = vweird.f32 %v218
    %vm225 = vmor %vm223, %vm224
    %v226 = vsel %vm225, %v218, %v222
    %v227 = vand.u32 2147483647, %v217
    %vm228 = vcmp.eq.f32.partialorder %v227, 8.507059e+37
    %v229 = vand.u32 %v217, 2147483648
    %v230 = vor.u32 1.1754944e-38, %v229
    %v231 = vsel %vm228, %v230, %v226
    %v232 = vmul.f32 %v214, %v231
    %v234 = vrot.slane %v204, 6
    %v236 = vsub.f32 %v205, %v234
    %v237 = vmax.f32 %v236, 0.0
    %v239 = vrot.slane %v237, 1
    %v241 = vmul.f32 %v237, %v239
    %v242 = vsub.f32 %v241, %v216
    %v243 = vadd.f32 %v241, 1e-07
    %v244 = vrcp.pop %v243
    %v245 = vmul.f32 %v243, %v244
    %v246 = vsub.f32 1.0, %v245
    %v247 = vmul.f32 %v244, %v246
    %v248 = vadd.f32 %v244, %v247
    %vm249 = vweird.f32 %v243
    %vm250 = vweird.f32 %v244
    %vm251 = vmor %vm249, %vm250
    %v252 = vsel %vm251, %v244, %v248
    %v253 = vand.u32 2147483647, %v243
    %vm254 = vcmp.eq.f32.partialorder %v253, 8.507059e+37
    %v255 = vand.u32 %v243, 2147483648
    %v256 = vor.u32 1.1754944e-38, %v255
    %v257 = vsel %vm254, %v256, %v252
    %v258 = vmul.f32 %v242, %v257
    %v259 = vsub.f32 %v232, %v258
    %v260 = vsub.f32 1.0, %v259
    %v262 = vrot.slane %v260, 2
    %vm264 = vcmask 32768
    %v265 = vsel %vm264, %v262, 0.0
    %266 = vadd.xlane.f32.xlu0 %v265
    %v267 = vpop.xlane.xlu0 %266
    %v268 = vrot.slane %v267, 4
    %v269 = vadd.f32 %v267, %v268
    %v270 = vrot.slane %v269, 2
    %v271 = vadd.f32 %v269, %v270
    %v272 = vrot.slane %v271, 1
    %v273 = vadd.f32 %v271, %v272
    %s274 = vtos %v273
    %v275 = vstv %s274
    %vm276 = vcmask 7168
    %v277 = vsel %vm276, %v185, %v275
    %vm278 = vcmask 8192
    %279 = vst.msk [vmem:[#allocation12] sm:$0x1] %vm278, %v277
    // Predicated region
    $region46: #{tpu_custom_call.1} parent=1 // pred_check
      _
    $region47: #{tpu_custom_call.1} parent=1 // pred_check_branch
      %281 = sbr.rel (0) target = $region49
    $region48: #{tpu_custom_call.1} parent=1 // pred_region
      %283 = vsyncadd [#allocation4], 0
      %s285 = sshll.u32 [#allocation11], 4
      %s286 = int_to_ptr.vmem [resolvable:$true] %s285
      %s287 = sshll.u32 %s6, 4
      %s288 = int_to_ptr.hbm [resolvable:$true] %s287
      %290 = dma.vmem_to_hbm [thread:$0]  %s286, 16, %s288, [#allocation4]
    $region49: #{tpu_custom_call.1} parent=1 // pred_fallthru
      _
    // Predicated region
    $region50: #{tpu_custom_call.1} parent=1 // pred_check
      _
    $region51: #{tpu_custom_call.1} parent=1 // pred_check_branch
      %292 = sbr.rel (0) target = $region53
    $region52: #{tpu_custom_call.1} parent=1 // pred_region
      %294 = vsyncadd [#allocation13], 0
      %s296 = sshll.u32 [#allocation12], 4
      %s297 = int_to_ptr.vmem [resolvable:$true] %s296
      %s298 = sshll.u32 %s7, 4
      %s299 = int_to_ptr.hbm [resolvable:$true] %s298
      %301 = dma.vmem_to_hbm [thread:$0]  %s297, 16, %s299, [#allocation13]
    $region53: #{tpu_custom_call.1} parent=1 // pred_fallthru
      _
    // Predicated region
    $region54: #{tpu_custom_call.1} parent=1 // pred_check
      _
    $region55: #{tpu_custom_call.1} parent=1 // pred_check_branch
      %303 = sbr.rel (0) target = $region57
    $region56: #{tpu_custom_call.1} parent=1 // pred_region
      %305 = dma.done [#allocation4], 16
    $region57: #{tpu_custom_call.1} parent=1 // pred_fallthru
      _
    // Predicated region
    $region58: #{tpu_custom_call.1} parent=1 // pred_check
      _
    $region59: #{tpu_custom_call.1} parent=1 // pred_check_branch
      %307 = sbr.rel (0) target = $region61
    $region60: #{tpu_custom_call.1} parent=1 // pred_region
      %309 = dma.done [#allocation13], 16
    $region61: #{tpu_custom_call.1} parent=1 // pred_fallthru
      _
    %310 = vsyncpa [#allocation3], 1
    %311 = vsyncpa [#allocation6], 1
    %312 = vsyncpa [#allocation9], 1
    %313 = vsyncpa [#allocation4], 1
    %314 = vsyncpa [#allocation13], 1

</llo_original>
